<compile_context>
chip_gen: v5e
topology: v5e:2x2
jax: 0.10.0
libtpu: 0.0.40
codegen_flags: <defaults>
</compile_context>

<pallas_src>
import jax
import jax.numpy as jnp
from jax.experimental import pallas as pl
from jax.experimental.pallas import tpu as pltpu

LANES = 128  # lane width: batch elements per output row


def _logreg_kernel(w_ref, b_ref, x_ref, o_ref):
    # w_ref: SMEM [IN] f32        b_ref: SMEM [1] f32
    # x_ref: VMEM [IN, TILE_R, 128] (batch spread over sublanes x lanes)
    # o_ref: VMEM [TILE_R, 128]
    #
    # IN is tiny (2): skip the MXU entirely (a K=2, N=1 matmul would push an
    # almost-empty tile through the systolic array) and do the contraction as
    # scalar-times-vreg VPU FMAs.
    z = x_ref[0] * w_ref[0] + b_ref[0]
    for k in range(1, x_ref.shape[0]):  # static unroll over IN
        z = z + x_ref[k] * w_ref[k]
    # sigmoid(z) = 0.5 * tanh(0.5 * z) + 0.5  -> single EUP push, exact,
    # no overflow for very negative z.
    o_ref[...] = (0.5 * jnp.tanh(0.5 * z) + 0.5).astype(o_ref.dtype)


def _round_up(a, m):
    return (a + m - 1) // m * m


def logistic_regression(x, w, b, *, tile_rows=512):
    """y = sigmoid(x @ W^T + b).

    x: [N, in_features] f32
    w: [out_features, in_features] (nn.Linear convention), out_features must be 1
    b: [out_features]
    """
    n, in_f = x.shape
    out_f = w.shape[0]
    assert out_f == 1, "kernel is specialized for out_features == 1"

    # Parameters as SMEM scalars (no lane-padded VMEM residents).
    w_s = w.reshape(in_f).astype(jnp.float32)
    b_s = b.reshape(1).astype(jnp.float32)

    # Batch -> (rows, 128) planes.  Rows padded to a multiple of 8 (sublane
    # granularity); for large N, tiled in `tile_rows`-row blocks (64K batch
    # elements / step at the default), giving many grid steps for v7x's 2 TCs.
    rows = _round_up(pl.cdiv(n, LANES), 8)
    tile_r = min(tile_rows, rows)
    rows_pad = _round_up(rows, tile_r)
    n_pad = rows_pad * LANES

    x_p = x.astype(jnp.float32)
    if n_pad != n:
        x_p = jnp.pad(x_p, ((0, n_pad - n), (0, 0)))
    # IN lane-dense planes: planes[k] = x[:, k] reshaped to [rows_pad, 128].
    planes = x_p.T.reshape(in_f, rows_pad, LANES)

    # Per-step VMEM: (IN + 1) * tile_r * 128 * 4 B, double-buffered
    # (default tile_rows=512 -> ~1.5 MiB) — well under every generation's
    # scoped VMEM default, so no vmem_limit override needed.
    out = pl.pallas_call(
        _logreg_kernel,
        out_shape=jax.ShapeDtypeStruct((rows_pad, LANES), jnp.float32),
        grid=(rows_pad // tile_r,),
        in_specs=[
            pl.BlockSpec(memory_space=pltpu.MemorySpace.SMEM),  # w scalars
            pl.BlockSpec(memory_space=pltpu.MemorySpace.SMEM),  # b scalar
            pl.BlockSpec((in_f, tile_r, LANES), lambda i: (0, i, 0)),  # x planes
        ],
        out_specs=pl.BlockSpec((tile_r, LANES), lambda i: (i, 0)),
        compiler_params=pltpu.CompilerParams(
            dimension_semantics=("parallel",),  # batch tiles shard across TCs
        ),
    )(w_s, b_s, planes)

    # Flatten the lane-dense plane back to [N, 1]; near-free (no second pass
    # over a 128x-padded output).
    return out.reshape(-1)[:n].reshape(n, out_f)


if __name__ == "__main__":
    key = jax.random.PRNGKey(0)
    k_x, k_w, k_b = jax.random.split(key, 3)

    in_features, out_features = 2, 1
    batch = 8

    # nn.Linear-style init: U(-1/sqrt(in_features), 1/sqrt(in_features))
    bound = 1.0 / jnp.sqrt(jnp.float32(in_features))
    w = jax.random.uniform(k_w, (out_features, in_features), jnp.float32,
                           minval=-bound, maxval=bound)
    b = jax.random.uniform(k_b, (out_features,), jnp.float32,
                           minval=-bound, maxval=bound)
    x = jax.random.normal(k_x, (batch, in_features), jnp.float32)

    out = logistic_regression(x, w, b)
    out = jax.block_until_ready(out)

    # Pure-JAX reference (tight tolerance: tanh-sigmoid is exact, no approx).
    ref = jax.nn.sigmoid(x @ w.T + b.reshape(1, -1))
    assert out.shape == (batch, out_features)
    assert jnp.allclose(out, ref, atol=1e-5, rtol=1e-5), (
        f"max err {jnp.max(jnp.abs(out - ref))}")

    print("KERNEL_OK")
</pallas_src>

<mosaic_0001>
module attributes {stable_mosaic.version = 11 : i64} {
  func.func @_logreg_kernel(%arg0: i32, %arg1: memref<2xf32, #tpu.memory_space<smem>>, %arg2: memref<1xf32, #tpu.memory_space<smem>>, %arg3: memref<2x8x128xf32, #tpu.memory_space<vmem>>, %arg4: memref<8x128xf32, #tpu.memory_space<vmem>>) attributes {dimension_semantics = [#tpu.dimension_semantics<parallel>], iteration_bounds = array<i64: 1>, scalar_prefetch = 0 : i64, scratch_operands = 0 : i64, tpu.core_type = #tpu.core_type<tc>, window_params = [{transform_indices = @transform_0, window_bounds = array<i64: 2>}, {transform_indices = @transform_1, window_bounds = array<i64: 1>}, {transform_indices = @transform_2, window_bounds = array<i64: 2, 8, 128>}, {transform_indices = @transform_3, window_bounds = array<i64: 8, 128>}]} {
    %c0 = arith.constant 0 : index
    %c0_0 = arith.constant 0 : index
    %c0_1 = arith.constant 0 : index
    %0 = vector.load %arg3[%c0, %c0_0, %c0_1] : memref<2x8x128xf32, #tpu.memory_space<vmem>>, vector<1x8x128xf32>
    %1 = vector.shape_cast %0 : vector<1x8x128xf32> to vector<8x128xf32>
    %c0_2 = arith.constant 0 : index
    %2 = memref.load %arg1[%c0_2] : memref<2xf32, #tpu.memory_space<smem>>
    %3 = vector.broadcast %2 : f32 to vector<8x128xf32>
    %4 = arith.mulf %1, %3 : vector<8x128xf32>
    %c0_3 = arith.constant 0 : index
    %5 = memref.load %arg2[%c0_3] : memref<1xf32, #tpu.memory_space<smem>>
    %6 = vector.broadcast %5 : f32 to vector<8x128xf32>
    %7 = arith.addf %4, %6 : vector<8x128xf32>
    %c1 = arith.constant 1 : index
    %c0_4 = arith.constant 0 : index
    %c0_5 = arith.constant 0 : index
    %8 = vector.load %arg3[%c1, %c0_4, %c0_5] : memref<2x8x128xf32, #tpu.memory_space<vmem>>, vector<1x8x128xf32>
    %9 = vector.shape_cast %8 : vector<1x8x128xf32> to vector<8x128xf32>
    %c1_6 = arith.constant 1 : index
    %10 = memref.load %arg1[%c1_6] : memref<2xf32, #tpu.memory_space<smem>>
    %11 = vector.broadcast %10 : f32 to vector<8x128xf32>
    %12 = arith.mulf %9, %11 : vector<8x128xf32>
    %13 = arith.addf %7, %12 : vector<8x128xf32>
    %cst = arith.constant 5.000000e-01 : f32
    %14 = vector.broadcast %cst : f32 to vector<8x128xf32>
    %15 = arith.mulf %14, %13 : vector<8x128xf32>
    %16 = math.tanh %15 : vector<8x128xf32>
    %cst_7 = arith.constant 5.000000e-01 : f32
    %17 = vector.broadcast %cst_7 : f32 to vector<8x128xf32>
    %18 = arith.mulf %17, %16 : vector<8x128xf32>
    %cst_8 = arith.constant 5.000000e-01 : f32
    %19 = vector.broadcast %cst_8 : f32 to vector<8x128xf32>
    %20 = arith.addf %18, %19 : vector<8x128xf32>
    %c0_9 = arith.constant 0 : index
    %c0_10 = arith.constant 0 : index
    %21 = vector.load %arg4[%c0_9, %c0_10] : memref<8x128xf32, #tpu.memory_space<vmem>>, vector<8x128xf32>
    tpu.vector_store %arg4[%c0_9, %c0_10], %20 {strides = array<i32>} : memref<8x128xf32, #tpu.memory_space<vmem>>, vector<8x128xf32>,
    return
  }
  func.func @transform_0(%arg0: i32) -> i32 {
    %c0_i32 = arith.constant 0 : i32
    %c0_i32_0 = arith.constant 0 : i32
    return %c0_i32 : i32
  }
  func.func @transform_1(%arg0: i32) -> i32 {
    %c0_i32 = arith.constant 0 : i32
    %c0_i32_0 = arith.constant 0 : i32
    return %c0_i32 : i32
  }
  func.func @transform_2(%arg0: i32) -> (i32, i32, i32) {
    %c0_i32 = arith.constant 0 : i32
    %c0_i32_0 = arith.constant 0 : i32
    %c0_i32_1 = arith.constant 0 : i32
    return %c0_i32, %arg0, %c0_i32_0 : i32, i32, i32
  }
  func.func @transform_3(%arg0: i32) -> (i32, i32) {
    %c0_i32 = arith.constant 0 : i32
    %c0_i32_0 = arith.constant 0 : i32
    return %arg0, %c0_i32 : i32, i32
  }
}

</mosaic_0001>

<llo_original>
// kernel: tpu_custom_call.1
$region0: #{tpu_custom_call.1}
  #allocation0 [shape = 'u32[]', space=smem, size = 0x4, offset = 0x4, fixed_abs, tag = 'smem constant byte address 0x4 - core index']
  #allocation1 [shape = 'u32[72,128]{1,0:T(1,128)}', space=vmem, size = 0x9000, scoped, tag = 'internal scratch']
  #allocation2 [shape = 'f32[1]{0:T(128)S(6)}', space=smem, size = 0x200, scoped, tag = 'scoped memory for tpu_custom_call.1']
  %s0 = inlined_call_operand.vmem [shape: f32[2], index: 0, kind: input, shape index: {}]
  %s1 = inlined_call_operand.<no memory space> [shape: f32[1], index: 1, kind: input, shape index: {}]
  %s2 = inlined_call_operand.hbm [shape: f32[2,8,128], index: 2, kind: input, shape index: {}]
  %s3 = inlined_call_operand.hbm [shape: f32[8,128], index: 3, kind: output, shape index: {}]
  %s4 = sld [smem:[#allocation0]]
  $region30: #{tpu_custom_call.1} parent=0
    _
  %s6 = ssub.s32 1, %s4
  %s7 = scalar_select 0, %s6, %s4
  %8 = sst [smem:[#allocation2]] %s1
  $region1: #{tpu_custom_call.1} parent=0
    #allocation3 [shape = 'u8[512]{0}', space=smem, size = 0x200, scoped, tag = 'input window, operand 0, single buffered']
    #allocation4 [shape = 's32[1]{0}', space=sflag, size = 0x4, scoped, tag = 'scoped memory for tpu_custom_call.1']
    #allocation5 [shape = 's32[1]{0}', space=sflag, size = 0x4, scoped, tag = 'scoped memory for tpu_custom_call.1']
    #allocation6 [shape = 's32[1]{0}', space=sflag, size = 0x4, scoped, tag = 'scoped memory for tpu_custom_call.1']
    #allocation7 [shape = 'u8[8192]{0}', space=vmem, size = 0x2000, scoped, tag = 'input window, operand 2, single buffered']
    #allocation8 [shape = 'u8[4096]{0}', space=vmem, size = 0x1000, scoped, tag = 'output window, operand 0, single buffered']
    %9 = vsyncpa [#allocation6], 0
    %10 = vsyncpa [#allocation4], 0
    %11 = vsyncpa [#allocation5], 0
    // Predicated region
    $region2: #{tpu_custom_call.1} parent=1 // pred_check
      _
    $region3: #{tpu_custom_call.1} parent=1 // pred_check_branch
      %13 = sbr.rel (0) target = $region5
    $region4: #{tpu_custom_call.1} parent=1 // pred_region
      %15 = vsyncadd [#allocation6], 0
      %s17 = sshll.u32 %s0, 4
      %s18 = int_to_ptr.vmem [resolvable:$true] %s17
      %20 = dma.vmem_to_smem %s18, 16, [#allocation3], [#allocation6]
    $region5: #{tpu_custom_call.1} parent=1 // pred_fallthru
      _
    // Predicated region
    $region6: #{tpu_custom_call.1} parent=1 // pred_check
      _
    $region7: #{tpu_custom_call.1} parent=1 // pred_check_branch
      %22 = sbr.rel (0) target = $region9
    $region8: #{tpu_custom_call.1} parent=1 // pred_region
      _
    $region9: #{tpu_custom_call.1} parent=1 // pred_fallthru
      _
    // Predicated region
    $region10: #{tpu_custom_call.1} parent=1 // pred_check
      _
    $region11: #{tpu_custom_call.1} parent=1 // pred_check_branch
      %24 = sbr.rel (0) target = $region13
    $region12: #{tpu_custom_call.1} parent=1 // pred_region
      %26 = vsyncadd [#allocation4], 0
      %s27 = sshll.u32 %s2, 4
      %s28 = int_to_ptr.hbm [resolvable:$true] %s27
      %s29 = sshll.u32 [#allocation7], 4
      %s30 = int_to_ptr.vmem [resolvable:$true] %s29
      %35 = dma.hbm_to_vmem [thread:$0]  %s28, 256, %s30, [#allocation4], 128, 128, 8
    $region13: #{tpu_custom_call.1} parent=1 // pred_fallthru
      _
    // Predicated region
    $region14: #{tpu_custom_call.1} parent=1 // pred_check
      _
    $region15: #{tpu_custom_call.1} parent=1 // pred_check_branch
      %37 = sbr.rel (0) target = $region17
    $region16: #{tpu_custom_call.1} parent=1 // pred_region
      %39 = dma.done [#allocation6], 16
    $region17: #{tpu_custom_call.1} parent=1 // pred_fallthru
      _
    // Predicated region
    $region18: #{tpu_custom_call.1} parent=1 // pred_check
      _
    $region19: #{tpu_custom_call.1} parent=1 // pred_check_branch
      %41 = sbr.rel (0) target = $region21
    $region20: #{tpu_custom_call.1} parent=1 // pred_region
      %43 = dma.done [#allocation4], 256
    $region21: #{tpu_custom_call.1} parent=1 // pred_fallthru
      _
    %44 = sfence
    %v45 = vld [vmem:[#allocation7] sm:$0xff]
    %s46 = sld [smem:[#allocation3]]
    %v47 = vstv %s46
    %v48 = vmul.f32 %v45, %v47
    %s49 = sld [smem:[#allocation2]]
    %v50 = vstv %s49
    %v51 = vadd.f32 %v48, %v50
    %s52 = scalar_lea.vmem [#allocation7], 8
    %v53 = vld [vmem:[%s52] sm:$0xff]
    %s54 = sld [smem:[#allocation3 + $0x1]]
    %v55 = vstv %s54
    %v56 = vmul.f32 %v53, %v55
    %v57 = vadd.f32 %v51, %v56
    %v58 = vmul.f32 %v57, 0.5
    %v59 = vtanh.pop %v58
    %v60 = vmul.f32 %v59, 0.5
    %v61 = vadd.f32 %v60, 0.5
    %62 = vst [vmem:[#allocation8] sm:$0xff] %v61
    // Predicated region
    $region22: #{tpu_custom_call.1} parent=1 // pred_check
      _
    $region23: #{tpu_custom_call.1} parent=1 // pred_check_branch
      %64 = sbr.rel (0) target = $region25
    $region24: #{tpu_custom_call.1} parent=1 // pred_region
      %66 = vsyncadd [#allocation5], 0
      %s68 = sshll.u32 [#allocation8], 4
      %s69 = int_to_ptr.vmem [resolvable:$true] %s68
      %s70 = sshll.u32 %s3, 4
      %s71 = int_to_ptr.hbm [resolvable:$true] %s70
      %73 = dma.vmem_to_hbm [thread:$0]  %s69, 128, %s71, [#allocation5]
    $region25: #{tpu_custom_call.1} parent=1 // pred_fallthru
      _
    // Predicated region
    $region26: #{tpu_custom_call.1} parent=1 // pred_check
      _
    $region27: #{tpu_custom_call.1} parent=1 // pred_check_branch
      %75 = sbr.rel (0) target = $region29
    $region28: #{tpu_custom_call.1} parent=1 // pred_region
      %77 = dma.done [#allocation5], 128
    $region29: #{tpu_custom_call.1} parent=1 // pred_fallthru
      _
    %78 = vsyncpa [#allocation4], 1
    %79 = vsyncpa [#allocation5], 1
    %80 = vsyncpa [#allocation6], 1

</llo_original>
